<compile_context>
chip_gen: v7x
topology: tpu7x:2x2x1
jax: 0.10.0
libtpu: 0.0.40
codegen_flags: <defaults>
</compile_context>

<pallas_src>
import functools

import jax
import jax.numpy as jnp
from jax.experimental import pallas as pl
from jax.experimental.pallas import tpu as pltpu

EPS = 1e-5


# --------------------------- fused Pallas kernel ----------------------------
def _fused_res_block_kernel(x_ref, w1_ref, b1_ref, w2_ref, b2_ref, o_ref,
                            hpad_ref, *, H, W, Cin, C1, C2):
    # x_ref    : (1, H+2, W*Cin)  row-zero-padded input image, bf16
    # w1_ref   : (3, W*Cin, W*C1) banded per-dy weights (dx + SAME-pad zeros
    #                             folded in), bf16
    # b1_ref   : (1, W*C1)        conv-bias + folded BN shift row, f32
    # w2_ref   : (3, W*C1, W*C2)  banded per-dy weights, bf16
    # b2_ref   : (1, W*C2)        folded bias row, f32
    # o_ref    : (1, H, W*C2)     lane-dense output (W*C2 multiple of 128)
    # hpad_ref : (H+2, W*C1)      bf16 VMEM scratch; rows 0 and H+1 are the
    #                             zero dy-halo, interior at lane offset 0.

    # Zero only the two dy-halo rows (tiny) -- never the whole tile.
    zero_row = jnp.zeros((1, W * C1), hpad_ref.dtype)
    hpad_ref[0:1, :] = zero_row
    hpad_ref[H + 1:H + 2, :] = zero_row

    # ---- conv1 (+ folded BN1) + ReLU: 3 banded, accumulating MXU matmuls ----
    acc1 = jnp.zeros((H, W * C1), jnp.float32)
    for dy in range(3):
        acc1 = acc1 + jnp.dot(x_ref[0, dy:dy + H, :], w1_ref[dy],
                              preferred_element_type=jnp.float32)
    h = jnp.maximum(acc1 + b1_ref[...], 0.0)

    # Intermediate stays resident in VMEM (bf16), full-width store at offset 0.
    hpad_ref[1:H + 1, :] = h.astype(hpad_ref.dtype)

    # ---- conv2 (+ folded BN2) + ReLU ----
    acc2 = jnp.zeros((H, W * C2), jnp.float32)
    for dy in range(3):
        acc2 = acc2 + jnp.dot(hpad_ref[dy:dy + H, :], w2_ref[dy],
                              preferred_element_type=jnp.float32)
    o_ref[0] = jnp.maximum(acc2 + b2_ref[...], 0.0).astype(o_ref.dtype)


# ------------------------------ host wrapper --------------------------------
def _banded_taps(w_hwio, width):
    """(3,3,Ci,Co) HWIO -> (3, width*Ci, width*Co) banded per-dy weights.

    dx is folded into the band offset.  SAME-padding left/right boundary zeros
    are encoded as *absent* rows (the offset eye drops out-of-range columns),
    so the kernel's lhs needs no lane padding at all.
    """
    kh, kw, ci, co = w_hwio.shape
    bands = []
    for dy in range(kh):
        b = jnp.zeros((width, ci, width, co), jnp.float32)
        for dx in range(kw):
            # output col w reads source col s = w + dx - 1  <=>  w = s + (1-dx)
            shift = jnp.eye(width, width, k=1 - dx, dtype=jnp.float32)
            b = b + jnp.einsum("sw,ic->siwc", shift,
                               w_hwio[dy, dx].astype(jnp.float32))
        bands.append(b.reshape(width * ci, width * co))
    return jnp.stack(bands, axis=0)


def residual_block_forward(x_nchw, p):
    # TODO(synk): BatchNorm implemented in inference mode (running stats folded
    # into the conv weights/bias); training-mode batch statistics not computed.
    x = jnp.transpose(x_nchw, (0, 2, 3, 1)).astype(jnp.float32)  # NCHW -> NHWC
    N, H, W, Cin = x.shape
    C1 = p["w1"].shape[-1]
    C2 = p["w2"].shape[-1]

    # Fold BN scale into the conv weights, conv bias + BN shift into one bias.
    s1 = p["g1"] / jnp.sqrt(p["var1"] + EPS)
    s2 = p["g2"] / jnp.sqrt(p["var2"] + EPS)
    w1 = p["w1"] * s1
    w2 = p["w2"] * s2
    b1 = p["beta1"] + s1 * (p["b1"] - p["mean1"])
    b2 = p["beta2"] + s2 * (p["b2"] - p["mean2"])

    w1_band = _banded_taps(w1, W).astype(jnp.bfloat16)   # (3, W*Cin, W*C1)
    w2_band = _banded_taps(w2, W).astype(jnp.bfloat16)   # (3, W*C1,  W*C2)
    b1_row = jnp.tile(b1, (W,)).reshape(1, W * C1).astype(jnp.float32)
    b2_row = jnp.tile(b2, (W,)).reshape(1, W * C2).astype(jnp.float32)

    # 1-row zero pad on H only (dy halo); dx boundary zeros live in the
    # banded weights.  Cast to bf16 ONCE here (halves input DMA bytes).
    xp = jnp.pad(x, ((0, 0), (1, 1), (0, 0), (0, 0)))
    xp = xp.reshape(N, H + 2, W * Cin).astype(jnp.bfloat16)

    kernel = functools.partial(_fused_res_block_kernel,
                               H=H, W=W, Cin=Cin, C1=C1, C2=C2)

    flops = 2 * N * 3 * H * ((W * Cin) * (W * C1) + (W * C1) * (W * C2))
    bytes_accessed = (xp.size * 2 + w1_band.size * 2 + w2_band.size * 2 +
                      b1_row.size * 4 + b2_row.size * 4 + N * H * W * C2 * 4)

    out = pl.pallas_call(
        kernel,
        out_shape=jax.ShapeDtypeStruct((N, H, W * C2), jnp.float32),
        grid_spec=pltpu.PrefetchScalarGridSpec(
            num_scalar_prefetch=0,
            grid=(N,),
            in_specs=[
                pl.BlockSpec((1, H + 2, W * Cin), lambda n: (n, 0, 0)),
                pl.BlockSpec((3, W * Cin, W * C1), lambda n: (0, 0, 0)),
                pl.BlockSpec((1, W * C1), lambda n: (0, 0)),
                pl.BlockSpec((3, W * C1, W * C2), lambda n: (0, 0, 0)),
                pl.BlockSpec((1, W * C2), lambda n: (0, 0)),
            ],
            out_specs=pl.BlockSpec((1, H, W * C2), lambda n: (n, 0, 0)),
            scratch_shapes=[pltpu.VMEM((H + 2, W * C1), jnp.bfloat16)],
        ),
        compiler_params=pltpu.CompilerParams(
            dimension_semantics=("parallel",),
            vmem_limit_bytes=32 * 1024 * 1024,
        ),
        cost_estimate=pl.CostEstimate(
            flops=flops, transcendentals=0, bytes_accessed=bytes_accessed),
    )(xp, w1_band, b1_row, w2_band, b2_row)

    out = out.reshape(N, H, W, C2)
    return jnp.transpose(out, (0, 3, 1, 2))                # NHWC -> NCHW


# ---------------- pure-JAX reference (for correctness check) ----------------
def _ref_layer(x, w, b, g, beta, mean, var):
    y = jax.lax.conv_general_dilated(
        x, w, window_strides=(1, 1), padding="SAME",
        dimension_numbers=("NHWC", "HWIO", "NHWC")) + b
    y = (y - mean) * (g / jnp.sqrt(var + EPS)) + beta
    return jnp.maximum(y, 0.0)


def residual_block_ref(x_nchw, p):
    x = jnp.transpose(x_nchw, (0, 2, 3, 1))
    h = _ref_layer(x, p["w1"], p["b1"], p["g1"], p["beta1"], p["mean1"], p["var1"])
    y = _ref_layer(h, p["w2"], p["b2"], p["g2"], p["beta2"], p["mean2"], p["var2"])
    return jnp.transpose(y, (0, 3, 1, 2))


def init_params(key, cin, cout):
    ks = jax.random.split(key, 12)
    f32 = jnp.float32
    return {
        # conv1: Cin -> Cin (HWIO)
        "w1": 0.1 * jax.random.normal(ks[0], (3, 3, cin, cin), f32),
        "b1": 0.1 * jax.random.normal(ks[1], (cin,), f32),
        "g1": 1.0 + 0.1 * jax.random.normal(ks[2], (cin,), f32),
        "beta1": 0.1 * jax.random.normal(ks[3], (cin,), f32),
        "mean1": 0.05 * jax.random.normal(ks[4], (cin,), f32),
        "var1": 1.0 + 0.1 * jnp.abs(jax.random.normal(ks[5], (cin,), f32)),
        # conv2: Cin -> Cout (HWIO)
        "w2": 0.1 * jax.random.normal(ks[6], (3, 3, cin, cout), f32),
        "b2": 0.1 * jax.random.normal(ks[7], (cout,), f32),
        "g2": 1.0 + 0.1 * jax.random.normal(ks[8], (cout,), f32),
        "beta2": 0.1 * jax.random.normal(ks[9], (cout,), f32),
        "mean2": 0.05 * jax.random.normal(ks[10], (cout,), f32),
        "var2": 1.0 + 0.1 * jnp.abs(jax.random.normal(ks[11], (cout,), f32)),
    }


if __name__ == "__main__":
    key = jax.random.PRNGKey(0)
    k_x, k_p = jax.random.split(key)

    N, CIN, H, W = 2, 4, 16, 16
    COUT = 8
    x = jax.random.normal(k_x, (N, CIN, H, W), jnp.float32)   # NCHW like PyTorch
    params = init_params(k_p, CIN, COUT)

    out = jax.jit(residual_block_forward)(x, params)
    out = jax.block_until_ready(out)
    assert out.shape == (N, COUT, H, W), out.shape

    ref = residual_block_ref(x, params)
    err = float(jnp.max(jnp.abs(out - ref)))
    # bf16 activations/weights on the MXU -> looser tolerance than pure f32.
    assert err < 5e-2, f"max abs error {err}"

    print("KERNEL_OK")
</pallas_src>

<mosaic_0001>
module attributes {stable_mosaic.version = 11 : i64} {
  func.func @_fused_res_block_kernel(%arg0: i32, %arg1: memref<1x18x64xbf16, #tpu.memory_space<vmem>>, %arg2: memref<3x64x64xbf16, #tpu.memory_space<vmem>>, %arg3: memref<1x64xf32, #tpu.memory_space<vmem>>, %arg4: memref<3x64x128xbf16, #tpu.memory_space<vmem>>, %arg5: memref<1x128xf32, #tpu.memory_space<vmem>>, %arg6: memref<1x16x128xf32, #tpu.memory_space<vmem>>, %arg7: memref<18x64xbf16, #tpu.memory_space<vmem>>) attributes {dimension_semantics = [#tpu.dimension_semantics<parallel>], iteration_bounds = array<i64: 2>, scalar_prefetch = 0 : i64, scratch_operands = 1 : i64, tpu.core_type = #tpu.core_type<tc>, window_params = [{transform_indices = @transform_0, window_bounds = array<i64: 1, 18, 64>}, {pipeline_mode = #tpu.pipeline_mode<synchronous>, transform_indices = @transform_1, window_bounds = array<i64: 3, 64, 64>}, {pipeline_mode = #tpu.pipeline_mode<synchronous>, transform_indices = @transform_2, window_bounds = array<i64: 1, 64>}, {pipeline_mode = #tpu.pipeline_mode<synchronous>, transform_indices = @transform_3, window_bounds = array<i64: 3, 64, 128>}, {pipeline_mode = #tpu.pipeline_mode<synchronous>, transform_indices = @transform_4, window_bounds = array<i64: 1, 128>}, {transform_indices = @transform_5, window_bounds = array<i64: 1, 16, 128>}]} {
    %cst = arith.constant 0.000000e+00 : bf16
    %0 = vector.broadcast %cst : bf16 to vector<1x64xbf16>
    %c0 = arith.constant 0 : index
    %c0_0 = arith.constant 0 : index
    %1 = vector.load %arg7[%c0, %c0_0] : memref<18x64xbf16, #tpu.memory_space<vmem>>, vector<1x64xbf16>
    tpu.vector_store %arg7[%c0, %c0_0], %0 {strides = array<i32>} : memref<18x64xbf16, #tpu.memory_space<vmem>>, vector<1x64xbf16>,
    %c17 = arith.constant 17 : index
    %c0_1 = arith.constant 0 : index
    %2 = vector.load %arg7[%c17, %c0_1] : memref<18x64xbf16, #tpu.memory_space<vmem>>, vector<1x64xbf16>
    tpu.vector_store %arg7[%c17, %c0_1], %0 {strides = array<i32>} : memref<18x64xbf16, #tpu.memory_space<vmem>>, vector<1x64xbf16>,
    %cst_2 = arith.constant 0.000000e+00 : f32
    %3 = vector.broadcast %cst_2 : f32 to vector<16x64xf32>
    %c0_3 = arith.constant 0 : index
    %c0_4 = arith.constant 0 : index
    %c0_5 = arith.constant 0 : index
    %4 = vector.load %arg1[%c0_3, %c0_4, %c0_5] : memref<1x18x64xbf16, #tpu.memory_space<vmem>>, vector<1x16x64xbf16>
    %5 = vector.shape_cast %4 : vector<1x16x64xbf16> to vector<16x64xbf16>
    %c0_6 = arith.constant 0 : index
    %c0_7 = arith.constant 0 : index
    %c0_8 = arith.constant 0 : index
    %6 = vector.load %arg2[%c0_6, %c0_7, %c0_8] : memref<3x64x64xbf16, #tpu.memory_space<vmem>>, vector<1x64x64xbf16>
    %7 = vector.shape_cast %6 : vector<1x64x64xbf16> to vector<64x64xbf16>
    %cst_9 = arith.constant dense<0.000000e+00> : vector<16x64xf32>
    %8 = tpu.matmul %5, %7, %cst_9 {dimension_numbers = #tpu.dot_dimension_numbers<[1], [0], [0], [1], [0, 0, 1, 1], [], []>} : vector<16x64xbf16>, vector<64x64xbf16>, vector<16x64xf32> -> vector<16x64xf32>
    %9 = arith.addf %3, %8 : vector<16x64xf32>
    %c0_10 = arith.constant 0 : index
    %c1 = arith.constant 1 : index
    %c0_11 = arith.constant 0 : index
    %10 = vector.load %arg1[%c0_10, %c1, %c0_11] : memref<1x18x64xbf16, #tpu.memory_space<vmem>>, vector<1x16x64xbf16>
    %11 = vector.shape_cast %10 : vector<1x16x64xbf16> to vector<16x64xbf16>
    %c1_12 = arith.constant 1 : index
    %c0_13 = arith.constant 0 : index
    %c0_14 = arith.constant 0 : index
    %12 = vector.load %arg2[%c1_12, %c0_13, %c0_14] : memref<3x64x64xbf16, #tpu.memory_space<vmem>>, vector<1x64x64xbf16>
    %13 = vector.shape_cast %12 : vector<1x64x64xbf16> to vector<64x64xbf16>
    %cst_15 = arith.constant dense<0.000000e+00> : vector<16x64xf32>
    %14 = tpu.matmul %11, %13, %cst_15 {dimension_numbers = #tpu.dot_dimension_numbers<[1], [0], [0], [1], [0, 0, 1, 1], [], []>} : vector<16x64xbf16>, vector<64x64xbf16>, vector<16x64xf32> -> vector<16x64xf32>
    %15 = arith.addf %9, %14 : vector<16x64xf32>
    %c0_16 = arith.constant 0 : index
    %c2 = arith.constant 2 : index
    %c0_17 = arith.constant 0 : index
    %16 = vector.load %arg1[%c0_16, %c2, %c0_17] : memref<1x18x64xbf16, #tpu.memory_space<vmem>>, vector<1x16x64xbf16>
    %17 = vector.shape_cast %16 : vector<1x16x64xbf16> to vector<16x64xbf16>
    %c2_18 = arith.constant 2 : index
    %c0_19 = arith.constant 0 : index
    %c0_20 = arith.constant 0 : index
    %18 = vector.load %arg2[%c2_18, %c0_19, %c0_20] : memref<3x64x64xbf16, #tpu.memory_space<vmem>>, vector<1x64x64xbf16>
    %19 = vector.shape_cast %18 : vector<1x64x64xbf16> to vector<64x64xbf16>
    %cst_21 = arith.constant dense<0.000000e+00> : vector<16x64xf32>
    %20 = tpu.matmul %17, %19, %cst_21 {dimension_numbers = #tpu.dot_dimension_numbers<[1], [0], [0], [1], [0, 0, 1, 1], [], []>} : vector<16x64xbf16>, vector<64x64xbf16>, vector<16x64xf32> -> vector<16x64xf32>
    %21 = arith.addf %15, %20 : vector<16x64xf32>
    %c0_22 = arith.constant 0 : index
    %c0_23 = arith.constant 0 : index
    %22 = vector.load %arg3[%c0_22, %c0_23] : memref<1x64xf32, #tpu.memory_space<vmem>>, vector<1x64xf32>
    %23 = vector.broadcast %22 : vector<1x64xf32> to vector<16x64xf32>
    %24 = arith.addf %21, %23 : vector<16x64xf32>
    %cst_24 = arith.constant 0.000000e+00 : f32
    %25 = vector.broadcast %cst_24 : f32 to vector<16x64xf32>
    %26 = arith.maximumf %24, %25 : vector<16x64xf32>
    %27 = arith.truncf %26 : vector<16x64xf32> to vector<16x64xbf16>
    %c1_25 = arith.constant 1 : index
    %c0_26 = arith.constant 0 : index
    %28 = vector.load %arg7[%c1_25, %c0_26] : memref<18x64xbf16, #tpu.memory_space<vmem>>, vector<16x64xbf16>
    tpu.vector_store %arg7[%c1_25, %c0_26], %27 {strides = array<i32>} : memref<18x64xbf16, #tpu.memory_space<vmem>>, vector<16x64xbf16>,
    %cst_27 = arith.constant 0.000000e+00 : f32
    %29 = vector.broadcast %cst_27 : f32 to vector<16x128xf32>
    %c0_28 = arith.constant 0 : index
    %c0_29 = arith.constant 0 : index
    %30 = vector.load %arg7[%c0_28, %c0_29] : memref<18x64xbf16, #tpu.memory_space<vmem>>, vector<16x64xbf16>
    %c0_30 = arith.constant 0 : index
    %c0_31 = arith.constant 0 : index
    %c0_32 = arith.constant 0 : index
    %31 = vector.load %arg4[%c0_30, %c0_31, %c0_32] : memref<3x64x128xbf16, #tpu.memory_space<vmem>>, vector<1x64x128xbf16>
    %32 = vector.shape_cast %31 : vector<1x64x128xbf16> to vector<64x128xbf16>
    %cst_33 = arith.constant dense<0.000000e+00> : vector<16x128xf32>
    %33 = tpu.matmul %30, %32, %cst_33 {dimension_numbers = #tpu.dot_dimension_numbers<[1], [0], [0], [1], [0, 0, 1, 1], [], []>} : vector<16x64xbf16>, vector<64x128xbf16>, vector<16x128xf32> -> vector<16x128xf32>
    %34 = arith.addf %29, %33 : vector<16x128xf32>
    %c1_34 = arith.constant 1 : index
    %c0_35 = arith.constant 0 : index
    %35 = vector.load %arg7[%c1_34, %c0_35] : memref<18x64xbf16, #tpu.memory_space<vmem>>, vector<16x64xbf16>
    %c1_36 = arith.constant 1 : index
    %c0_37 = arith.constant 0 : index
    %c0_38 = arith.constant 0 : index
    %36 = vector.load %arg4[%c1_36, %c0_37, %c0_38] : memref<3x64x128xbf16, #tpu.memory_space<vmem>>, vector<1x64x128xbf16>
    %37 = vector.shape_cast %36 : vector<1x64x128xbf16> to vector<64x128xbf16>
    %cst_39 = arith.constant dense<0.000000e+00> : vector<16x128xf32>
    %38 = tpu.matmul %35, %37, %cst_39 {dimension_numbers = #tpu.dot_dimension_numbers<[1], [0], [0], [1], [0, 0, 1, 1], [], []>} : vector<16x64xbf16>, vector<64x128xbf16>, vector<16x128xf32> -> vector<16x128xf32>
    %39 = arith.addf %34, %38 : vector<16x128xf32>
    %c2_40 = arith.constant 2 : index
    %c0_41 = arith.constant 0 : index
    %40 = vector.load %arg7[%c2_40, %c0_41] : memref<18x64xbf16, #tpu.memory_space<vmem>>, vector<16x64xbf16>
    %c2_42 = arith.constant 2 : index
    %c0_43 = arith.constant 0 : index
    %c0_44 = arith.constant 0 : index
    %41 = vector.load %arg4[%c2_42, %c0_43, %c0_44] : memref<3x64x128xbf16, #tpu.memory_space<vmem>>, vector<1x64x128xbf16>
    %42 = vector.shape_cast %41 : vector<1x64x128xbf16> to vector<64x128xbf16>
    %cst_45 = arith.constant dense<0.000000e+00> : vector<16x128xf32>
    %43 = tpu.matmul %40, %42, %cst_45 {dimension_numbers = #tpu.dot_dimension_numbers<[1], [0], [0], [1], [0, 0, 1, 1], [], []>} : vector<16x64xbf16>, vector<64x128xbf16>, vector<16x128xf32> -> vector<16x128xf32>
    %44 = arith.addf %39, %43 : vector<16x128xf32>
    %c0_46 = arith.constant 0 : index
    %c0_47 = arith.constant 0 : index
    %45 = vector.load %arg5[%c0_46, %c0_47] : memref<1x128xf32, #tpu.memory_space<vmem>>, vector<1x128xf32>
    %46 = vector.broadcast %45 : vector<1x128xf32> to vector<16x128xf32>
    %47 = arith.addf %44, %46 : vector<16x128xf32>
    %cst_48 = arith.constant 0.000000e+00 : f32
    %48 = vector.broadcast %cst_48 : f32 to vector<16x128xf32>
    %49 = arith.maximumf %47, %48 : vector<16x128xf32>
    %c0_49 = arith.constant 0 : index
    %c0_50 = arith.constant 0 : index
    %c0_51 = arith.constant 0 : index
    %50 = vector.load %arg6[%c0_49, %c0_50, %c0_51] : memref<1x16x128xf32, #tpu.memory_space<vmem>>, vector<1x16x128xf32>
    %51 = vector.shape_cast %50 : vector<1x16x128xf32> to vector<16x128xf32>
    %52 = vector.shape_cast %49 : vector<16x128xf32> to vector<1x16x128xf32>
    tpu.vector_store %arg6[%c0_49, %c0_50, %c0_51], %52 {strides = array<i32>} : memref<1x16x128xf32, #tpu.memory_space<vmem>>, vector<1x16x128xf32>,
    return
  }
  func.func @transform_0(%arg0: i32) -> (i32, i32, i32) {
    %c0_i32 = arith.constant 0 : i32
    %c0_i32_0 = arith.constant 0 : i32
    %c0_i32_1 = arith.constant 0 : i32
    return %arg0, %c0_i32, %c0_i32_0 : i32, i32, i32
  }
  func.func @transform_1(%arg0: i32) -> (i32, i32, i32) {
    %c0_i32 = arith.constant 0 : i32
    %c0_i32_0 = arith.constant 0 : i32
    %c0_i32_1 = arith.constant 0 : i32
    %c0_i32_2 = arith.constant 0 : i32
    return %c0_i32, %c0_i32_0, %c0_i32_1 : i32, i32, i32
  }
  func.func @transform_2(%arg0: i32) -> (i32, i32) {
    %c0_i32 = arith.constant 0 : i32
    %c0_i32_0 = arith.constant 0 : i32
    %c0_i32_1 = arith.constant 0 : i32
    return %c0_i32, %c0_i32_0 : i32, i32
  }
  func.func @transform_3(%arg0: i32) -> (i32, i32, i32) {
    %c0_i32 = arith.constant 0 : i32
    %c0_i32_0 = arith.constant 0 : i32
    %c0_i32_1 = arith.constant 0 : i32
    %c0_i32_2 = arith.constant 0 : i32
    return %c0_i32, %c0_i32_0, %c0_i32_1 : i32, i32, i32
  }
  func.func @transform_4(%arg0: i32) -> (i32, i32) {
    %c0_i32 = arith.constant 0 : i32
    %c0_i32_0 = arith.constant 0 : i32
    %c0_i32_1 = arith.constant 0 : i32
    return %c0_i32, %c0_i32_0 : i32, i32
  }
  func.func @transform_5(%arg0: i32) -> (i32, i32, i32) {
    %c0_i32 = arith.constant 0 : i32
    %c0_i32_0 = arith.constant 0 : i32
    %c0_i32_1 = arith.constant 0 : i32
    return %arg0, %c0_i32, %c0_i32_0 : i32, i32, i32
  }
}

</mosaic_0001>

<llo_original>
// kernel: tile.13
$region0: #{tile.13}
  #allocation0 [shape = 's32[1]{0}', space=sflag, size = 0x4, scoped, tag = 'scoped memory for tile.13']
  %s0 = inlined_call_operand.vmem [shape: f32[4], index: 0, kind: input, shape index: {}]
  %s1 = inlined_call_operand.vmem [shape: f32[16,4], index: 1, kind: output, shape index: {}]
  // Predicated region
  $region2: #{tile.13} parent=0 // pred_check
    _
  $region3: #{tile.13} parent=0 // pred_check_branch
    %3 = sbr.rel (0) target = $region5
  $region4: #{tile.13} parent=0 // pred_region
    _
  $region5: #{tile.13} parent=0 // pred_fallthru
    _
  %v4 = vld [vmem:[%s0] ss:$0 sm:$0xff]
  %5 = vst [vmem:[%s1] sm:$0xff] %v4
  %s6 = scalar_lea.vmem %s1, 8
  %7 = vst [vmem:[%s6] sm:$0xff] %v4

// kernel: tile.14
$region0: #{tile.14}
  %s0 = inlined_call_operand.vmem [shape: f32[16,4], index: 0, kind: input, shape index: {}]
  %s1 = inlined_call_operand.vmem [shape: f32[1,64], index: 1, kind: output, shape index: {}]
  $region1: #{tile.14} parent=0
    #allocation0 [shape = 'u8[4096]{0}', space=vmem, size = 0x1000, scoped, tag = 'scoped mem for output reshape']
    %v2 = vld [vmem:[%s0] sm:$0x1]
    %vm3 = vcmask 31744
    %4 = vst.msk [vmem:[#allocation0] sm:$0x1] %vm3, %v2
    %s5 = scalar_lea.vmem %s0, 15
    %v6 = vld [vmem:[%s5] sm:$0x1]
    %7 = vrot.lane.b32.xlu0 %v6, 60
    %v8 = vpop.permute.xlu0 %7
    %vm9 = vcmask 523744
    %10 = vst.msk [vmem:[#allocation0] sm:$0x1] %vm9, %v8
    %s11 = scalar_lea.vmem %s0, 14
    %v12 = vld [vmem:[%s11] sm:$0x1]
    %13 = vrot.lane.b32.xlu0 %v12, 56
    %v14 = vpop.permute.xlu0 %13
    %vm15 = vcmask 490944
    %16 = vst.msk [vmem:[#allocation0] sm:$0x1] %vm15, %v14
    %s17 = scalar_lea.vmem %s0, 13
    %v18 = vld [vmem:[%s17] sm:$0x1]
    %19 = vrot.lane.b32.xlu0 %v18, 52
    %v20 = vpop.permute.xlu0 %19
    %vm21 = vcmask 458144
    %22 = vst.msk [vmem:[#allocation0] sm:$0x1] %vm21, %v20
    %s23 = scalar_lea.vmem %s0, 12
    %v24 = vld [vmem:[%s23] sm:$0x1]
    %25 = vrot.lane.b32.xlu0 %v24, 48
    %v26 = vpop.permute.xlu0 %25
    %vm27 = vcmask 425344
    %28 = vst.msk [vmem:[#allocation0] sm:$0x1] %vm27, %v26
    %s29 = scalar_lea.vmem %s0, 11
    %v30 = vld [vmem:[%s29] sm:$0x1]
    %31 = vrot.lane.b32.xlu0 %v30, 44
    %v32 = vpop.permute.xlu0 %31
    %vm33 = vcmask 392544
    %34 = vst.msk [vmem:[#allocation0] sm:$0x1] %vm33, %v32
    %s35 = scalar_lea.vmem %s0, 10
    %v36 = vld [vmem:[%s35] sm:$0x1]
    %37 = vrot.lane.b32.xlu0 %v36, 40
    %v38 = vpop.permute.xlu0 %37
    %vm39 = vcmask 359744
    %40 = vst.msk [vmem:[#allocation0] sm:$0x1] %vm39, %v38
    %s41 = scalar_lea.vmem %s0, 9
    %v42 = vld [vmem:[%s41] sm:$0x1]
    %43 = vrot.lane.b32.xlu0 %v42, 36
    %v44 = vpop.permute.xlu0 %43
    %vm45 = vcmask 326944
    %46 = vst.msk [vmem:[#allocation0] sm:$0x1] %vm45, %v44
    %s47 = scalar_lea.vmem %s0, 8
    %v48 = vld [vmem:[%s47] sm:$0x1]
    %49 = vrot.lane.b32.xlu0 %v48, 32
    %v50 = vpop.permute.xlu0 %49
    %vm51 = vcmask 294144
    %52 = vst.msk [vmem:[#allocation0] sm:$0x1] %vm51, %v50
    %s53 = scalar_lea.vmem %s0, 7
    %v54 = vld [vmem:[%s53] sm:$0x1]
    %55 = vrot.lane.b32.xlu0 %v54, 28
    %v56 = vpop.permute.xlu0 %55
    %vm57 = vcmask 261344
    %58 = vst.msk [vmem:[#allocation0] sm:$0x1] %vm57, %v56
    %s59 = scalar_lea.vmem %s0, 6
    %v60 = vld [vmem:[%s59] sm:$0x1]
    %61 = vrot.lane.b32.xlu0 %v60, 24
    %v62 = vpop.permute.xlu0 %61
    %vm63 = vcmask 228544
    %64 = vst.msk [vmem:[#allocation0] sm:$0x1] %vm63, %v62
    %s65 = scalar_lea.vmem %s0, 5
    %v66 = vld [vmem:[%s65] sm:$0x1]
    %67 = vrot.lane.b32.xlu0 %v66, 20
    %v68 = vpop.permute.xlu0 %67
    %vm69 = vcmask 195744
    %70 = vst.msk [vmem:[#allocation0] sm:$0x1] %vm69, %v68
    %s71 = scalar_lea.vmem %s0, 4
    %v72 = vld [vmem:[%s71] sm:$0x1]
    %73 = vrot.lane.b32.xlu0 %v72, 16
    %v74 = vpop.permute.xlu0 %73
    %vm75 = vcmask 162944
    %76 = vst.msk [vmem:[#allocation0] sm:$0x1] %vm75, %v74
    %s77 = scalar_lea.vmem %s0, 3
    %v78 = vld [vmem:[%s77] sm:$0x1]
    %79 = vrot.lane.b32.xlu0 %v78, 12
    %v80 = vpop.permute.xlu0 %79
    %vm81 = vcmask 130144
    %82 = vst.msk [vmem:[#allocation0] sm:$0x1] %vm81, %v80
    %s83 = scalar_lea.vmem %s0, 2
    %v84 = vld [vmem:[%s83] sm:$0x1]
    %85 = vrot.lane.b32.xlu0 %v84, 8
    %v86 = vpop.permute.xlu0 %85
    %vm87 = vcmask 97344
    %88 = vst.msk [vmem:[#allocation0] sm:$0x1] %vm87, %v86
    %s89 = scalar_lea.vmem %s0, 1
    %v90 = vld [vmem:[%s89] sm:$0x1]
    %91 = vrot.lane.b32.xlu0 %v90, 4
    %v92 = vpop.permute.xlu0 %91
    %vm93 = vcmask 64544
    %94 = vst.msk [vmem:[#allocation0] sm:$0x1] %vm93, %v92
    %s96 = sshllo.u32 0, 1
    %v98 = vld [vmem:[#allocation0] sm:%s96]
    %s99 = sshllo.u32 0, 1
    %100 = vst [vmem:[%s1] sm:%s99] %v98

// kernel: tile.18
$region0: #{tile.18}
  #allocation0 [shape = 's32[1]{0}', space=sflag, size = 0x4, scoped, tag = 'scoped memory for tile.18']
  %s0 = inlined_call_operand.vmem [shape: f32[8], index: 0, kind: input, shape index: {}]
  %s1 = inlined_call_operand.vmem [shape: f32[16,8], index: 1, kind: output, shape index: {}]
  // Predicated region
  $region2: #{tile.18} parent=0 // pred_check
    _
  $region3: #{tile.18} parent=0 // pred_check_branch
    %3 = sbr.rel (0) target = $region5
  $region4: #{tile.18} parent=0 // pred_region
    _
  $region5: #{tile.18} parent=0 // pred_fallthru
    _
  %v4 = vld [vmem:[%s0] ss:$0 sm:$0xff]
  %5 = vst [vmem:[%s1] sm:$0xff] %v4
  %s6 = scalar_lea.vmem %s1, 8
  %7 = vst [vmem:[%s6] sm:$0xff] %v4

// kernel: tile.19
$region0: #{tile.19}
  %s0 = inlined_call_operand.vmem [shape: f32[16,8], index: 0, kind: input, shape index: {}]
  %s1 = inlined_call_operand.vmem [shape: f32[1,128], index: 1, kind: output, shape index: {}]
  $region1: #{tile.19} parent=0
    #allocation0 [shape = 'u8[4096]{0}', space=vmem, size = 0x1000, scoped, tag = 'scoped mem for output reshape']
    %v2 = vld [vmem:[%s0] sm:$0x1]
    %vm3 = vcmask 64512
    %4 = vst.msk [vmem:[#allocation0] sm:$0x1] %vm3, %v2
    %s5 = scalar_lea.vmem %s0, 15
    %v6 = vld [vmem:[%s5] sm:$0x1]
    %7 = vrot.lane.b32.xlu0 %v6, 120
    %v8 = vpop.permute.xlu0 %7
    %vm9 = vcmask 1048512
    %10 = vst.msk [vmem:[#allocation0] sm:$0x1] %vm9, %v8
    %s11 = scalar_lea.vmem %s0, 14
    %v12 = vld [vmem:[%s11] sm:$0x1]
    %13 = vrot.lane.b32.xlu0 %v12, 112
    %v14 = vpop.permute.xlu0 %13
    %vm15 = vcmask 982912
    %16 = vst.msk [vmem:[#allocation0] sm:$0x1] %vm15, %v14
    %s17 = scalar_lea.vmem %s0, 13
    %v18 = vld [vmem:[%s17] sm:$0x1]
    %19 = vrot.lane.b32.xlu0 %v18, 104
    %v20 = vpop.permute.xlu0 %19
    %vm21 = vcmask 917312
    %22 = vst.msk [vmem:[#allocation0] sm:$0x1] %vm21, %v20
    %s23 = scalar_lea.vmem %s0, 12
    %v24 = vld [vmem:[%s23] sm:$0x1]
    %25 = vrot.lane.b32.xlu0 %v24, 96
    %v26 = vpop.permute.xlu0 %25
    %vm27 = vcmask 851712
    %28 = vst.msk [vmem:[#allocation0] sm:$0x1] %vm27, %v26
    %s29 = scalar_lea.vmem %s0, 11
    %v30 = vld [vmem:[%s29] sm:$0x1]
    %31 = vrot.lane.b32.xlu0 %v30, 88
    %v32 = vpop.permute.xlu0 %31
    %vm33 = vcmask 786112
    %34 = vst.msk [vmem:[#allocation0] sm:$0x1] %vm33, %v32
    %s35 = scalar_lea.vmem %s0, 10
    %v36 = vld [vmem:[%s35] sm:$0x1]
    %37 = vrot.lane.b32.xlu0 %v36, 80
    %v38 = vpop.permute.xlu0 %37
    %vm39 = vcmask 720512
    %40 = vst.msk [vmem:[#allocation0] sm:$0x1] %vm39, %v38
    %s41 = scalar_lea.vmem %s0, 9
    %v42 = vld [vmem:[%s41] sm:$0x1]
    %43 = vrot.lane.b32.xlu0 %v42, 72
    %v44 = vpop.permute.xlu0 %43
    %vm45 = vcmask 654912
    %46 = vst.msk [vmem:[#allocation0] sm:$0x1] %vm45, %v44
    %s47 = scalar_lea.vmem %s0, 8
    %v48 = vld [vmem:[%s47] sm:$0x1]
    %49 = vrot.lane.b32.xlu0 %v48, 64
    %v50 = vpop.permute.xlu0 %49
    %vm51 = vcmask 589312
    %52 = vst.msk [vmem:[#allocation0] sm:$0x1] %vm51, %v50
    %s53 = scalar_lea.vmem %s0, 7
    %v54 = vld [vmem:[%s53] sm:$0x1]
    %55 = vrot.lane.b32.xlu0 %v54, 56
    %v56 = vpop.permute.xlu0 %55
    %vm57 = vcmask 523712
    %58 = vst.msk [vmem:[#allocation0] sm:$0x1] %vm57, %v56
    %s59 = scalar_lea.vmem %s0, 6
    %v60 = vld [vmem:[%s59] sm:$0x1]
    %61 = vrot.lane.b32.xlu0 %v60, 48
    %v62 = vpop.permute.xlu0 %61
    %vm63 = vcmask 458112
    %64 = vst.msk [vmem:[#allocation0] sm:$0x1] %vm63, %v62
    %s65 = scalar_lea.vmem %s0, 5
    %v66 = vld [vmem:[%s65] sm:$0x1]
    %67 = vrot.lane.b32.xlu0 %v66, 40
    %v68 = vpop.permute.xlu0 %67
    %vm69 = vcmask 392512
    %70 = vst.msk [vmem:[#allocation0] sm:$0x1] %vm69, %v68
    %s71 = scalar_lea.vmem %s0, 4
    %v72 = vld [vmem:[%s71] sm:$0x1]
    %73 = vrot.lane.b32.xlu0 %v72, 32
    %v74 = vpop.permute.xlu0 %73
    %vm75 = vcmask 326912
    %76 = vst.msk [vmem:[#allocation0] sm:$0x1] %vm75, %v74
    %s77 = scalar_lea.vmem %s0, 3
    %v78 = vld [vmem:[%s77] sm:$0x1]
    %79 = vrot.lane.b32.xlu0 %v78, 24
    %v80 = vpop.permute.xlu0 %79
    %vm81 = vcmask 261312
    %82 = vst.msk [vmem:[#allocation0] sm:$0x1] %vm81, %v80
    %s83 = scalar_lea.vmem %s0, 2
    %v84 = vld [vmem:[%s83] sm:$0x1]
    %85 = vrot.lane.b32.xlu0 %v84, 16
    %v86 = vpop.permute.xlu0 %85
    %vm87 = vcmask 195712
    %88 = vst.msk [vmem:[#allocation0] sm:$0x1] %vm87, %v86
    %s89 = scalar_lea.vmem %s0, 1
    %v90 = vld [vmem:[%s89] sm:$0x1]
    %91 = vrot.lane.b32.xlu0 %v90, 8
    %v92 = vpop.permute.xlu0 %91
    %vm93 = vcmask 130112
    %94 = vst.msk [vmem:[#allocation0] sm:$0x1] %vm93, %v92
    %s96 = sshllo.u32 0, 1
    %v98 = vld [vmem:[#allocation0] sm:%s96]
    %s99 = sshllo.u32 0, 1
    %100 = vst [vmem:[%s1] sm:%s99] %v98

// kernel: residual_block_forward.1
$region0: #{residual_block_forward.1}
  #allocation0 [shape = 'u32[]', space=smem, size = 0x4, offset = 0x4, fixed_abs, tag = 'smem constant byte address 0x4 - core index']
  #allocation1 [shape = 'u32[144,128]{1,0:T(1,128)}', space=vmem, size = 0x12000, scoped, tag = 'internal scratch']
  #allocation2 [shape = 'bf16[18,64]{1,0:T(8,128)(2,1)}', space=vmem, size = 0x1800, scoped, tag = 'scratch operand']
  %s0 = inlined_call_operand.vmem [shape: bf16[2,18,64], index: 0, kind: input, shape index: {}]
  %s1 = inlined_call_operand.vmem [shape: bf16[3,64,64], index: 1, kind: input, shape index: {}]
  %s2 = inlined_call_operand.vmem [shape: f32[1,64], index: 2, kind: input, shape index: {}]
  %s3 = inlined_call_operand.vmem [shape: bf16[3,64,128], index: 3, kind: input, shape index: {}]
  %s4 = inlined_call_operand.vmem [shape: f32[1,128], index: 4, kind: input, shape index: {}]
  %s5 = inlined_call_operand.vmem [shape: f32[2,16,128], index: 5, kind: output, shape index: {}]
  %s6 = sld [smem:[#allocation0]]
  $region53: #{residual_block_forward.1} parent=0
    _
  %s8 = ssub.s32 1, %s6
  %s9 = scalar_select 0, %s8, %s6
  loop: start=0, step=1, limit=4
  $region2: #{residual_block_forward.1} parent=0 // loop_pre_header
    _
  $region3: #{residual_block_forward.1} parent=0 // loop_header
    %s11 = sphi 0, %s15
    %p12 = scmp.ge.s32.totalorder %s11, 4
    %s21 = sphi 0, %s23
    %s24 = sphi 0, %s21
    %s25 = sphi 0, %s24
    %s41 = sphi 0, %s25
    %s45 = sphi 0, %s45
    %s47 = sphi 0, %s45
    %s48 = sphi 0, %s47
    %s62 = sphi 0, %s48
    %s66 = sphi 0, %s66
    %s68 = sphi 0, %s66
    %s69 = sphi 0, %s68
    %s83 = sphi 0, %s69
    %s87 = sphi 0, %s87
    %s89 = sphi 0, %s87
    %s90 = sphi 0, %s89
    %s104 = sphi 0, %s90
    %s108 = sphi 0, %s108
    %s110 = sphi 0, %s108
    %s111 = sphi 0, %s110
    %s125 = sphi 0, %s111
    %s131 = sphi 0, %s133
    %s134 = sphi 0, %s131
    %s135 = sphi 0, %s134
    %s151 = sphi 0, %s135
  $region4: #{residual_block_forward.1} parent=0 // loop_header_branch
    %14 = sbr.rel (%p12) target = $region8
  $region5: #{residual_block_forward.1} parent=0 // loop_body
    %s16 = ssub.s32 %s11, 1
    %s17 = ssub.s32 %s11, 2
    %s18 = sadd.s32 %s11, 1
    %s19 = ssub.s32 %s11, %s18
    %p20 = scmp.eq.s32.totalorder %s19, 0
    %s22 = sadd.s32 %s21, 1
    %s23 = scalar_select %p20, %s21, %s22
    %p26 = pneg %p20
    %p27 = scmp.eq.s32.totalorder %s11, 1
    %p28 = por %p26, %p27
    %p29 = scmp.ne.s32.totalorder %s21, %s24
    %p30 = scmp.eq.s32.totalorder %s11, 0
    %p31 = por %p29, %p30
    %p32 = scmp.ne.s32.totalorder %s21, %s24
    %p33 = scmp.eq.s32.totalorder %s16, 1
    %p34 = por %p32, %p33
    %p35 = scmp.ne.s32.totalorder %s24, %s25
    %p36 = scmp.eq.s32.totalorder %s16, 0
    %p37 = por %p35, %p36
    %p38 = scmp.ne.s32.totalorder %s24, %s25
    %p39 = scmp.eq.s32.totalorder %s17, 1
    %p40 = por %p38, %p39
    %p42 = scmp.ne.s32.totalorder %s25, %s41
    %p43 = scmp.eq.s32.totalorder %s17, 0
    %p44 = por %p42, %p43
    %s46 = sadd.s32 %s45, 1
    %p49 = scmp.eq.s32.totalorder %s11, 1
    %p50 = scmp.ne.s32.totalorder %s45, %s47
    %p51 = scmp.eq.s32.totalorder %s11, 0
    %p52 = por %p50, %p51
    %p53 = scmp.ne.s32.totalorder %s45, %s47
    %p54 = scmp.eq.s32.totalorder %s16, 1
    %p55 = por %p53, %p54
    %p56 = scmp.ne.s32.totalorder %s47, %s48
    %p57 = scmp.eq.s32.totalorder %s16, 0
    %p58 = por %p56, %p57
    %p59 = scmp.ne.s32.totalorder %s47, %s48
    %p60 = scmp.eq.s32.totalorder %s17, 1
    %p61 = por %p59, %p60
    %p63 = scmp.ne.s32.totalorder %s48, %s62
    %p64 = scmp.eq.s32.totalorder %s17, 0
    %p65 = por %p63, %p64
    %s67 = sadd.s32 %s66, 1
    %p70 = scmp.eq.s32.totalorder %s11, 1
    %p71 = scmp.ne.s32.totalorder %s66, %s68
    %p72 = scmp.eq.s32.totalorder %s11, 0
    %p73 = por %p71, %p72
    %p74 = scmp.ne.s32.totalorder %s66, %s68
    %p75 = scmp.eq.s32.totalorder %s16, 1
    %p76 = por %p74, %p75
    %p77 = scmp.ne.s32.totalorder %s68, %s69
    %p78 = scmp.eq.s32.totalorder %s16, 0
    %p79 = por %p77, %p78
    %p80 = scmp.ne.s32.totalorder %s68, %s69
    %p81 = scmp.eq.s32.totalorder %s17, 1
    %p82 = por %p80, %p81
    %p84 = scmp.ne.s32.totalorder %s69, %s83
    %p85 = scmp.eq.s32.totalorder %s17, 0
    %p86 = por %p84, %p85
    %s88 = sadd.s32 %s87, 1
    %p91 = scmp.eq.s32.totalorder %s11, 1
    %p92 = scmp.ne.s32.totalorder %s87, %s89
    %p93 = scmp.eq.s32.totalorder %s11, 0
    %p94 = por %p92, %p93
    %p95 = scmp.ne.s32.totalorder %s87, %s89
    %p96 = scmp.eq.s32.totalorder %s16, 1
    %p97 = por %p95, %p96
    %p98 = scmp.ne.s32.totalorder %s89, %s90
    %p99 = scmp.eq.s32.totalorder %s16, 0
    %p100 = por %p98, %p99
    %p101 = scmp.ne.s32.totalorder %s89, %s90
    %p102 = scmp.eq.s32.totalorder %s17, 1
    %p103 = por %p101, %p102
    %p105 = scmp.ne.s32.totalorder %s90, %s104
    %p106 = scmp.eq.s32.totalorder %s17, 0
    %p107 = por %p105, %p106
    %s109 = sadd.s32 %s108, 1
    %p112 = scmp.eq.s32.totalorder %s11, 1
    %p113 = scmp.ne.s32.totalorder %s108, %s110
    %p114 = scmp.eq.s32.totalorder %s11, 0
    %p115 = por %p113, %p114
    %p116 = scmp.ne.s32.totalorder %s108, %s110
    %p117 = scmp.eq.s32.totalorder %s16, 1
    %p118 = por %p116, %p117
    %p119 = scmp.ne.s32.totalorder %s110, %s111
    %p120 = scmp.eq.s32.totalorder %s16, 0
    %p121 = por %p119, %p120
    %p122 = scmp.ne.s32.totalorder %s110, %s111
    %p123 = scmp.eq.s32.totalorder %s17, 1
    %p124 = por %p122, %p123
    %p126 = scmp.ne.s32.totalorder %s111, %s125
    %p127 = scmp.eq.s32.totalorder %s17, 0
    %p128 = por %p126, %p127
    %s129 = ssub.s32 %s11, %s18
    %p130 = scmp.eq.s32.totalorder %s129, 0
    %s132 = sadd.s32 %s131, 1
    %s133 = scalar_select %p130, %s131, %s132
    %p136 = pneg %p130
    %p137 = scmp.eq.s32.totalorder %s11, 1
    %p138 = por %p136, %p137
    %p139 = scmp.ne.s32.totalorder %s131, %s134
    %p140 = scmp.eq.s32.totalorder %s11, 0
    %p141 = por %p139, %p140
    %p142 = scmp.ne.s32.totalorder %s131, %s134
    %p143 = scmp.eq.s32.totalorder %s16, 1
    %p144 = por %p142, %p143
    %p145 = scmp.ne.s32.totalorder %s134, %s135
    %p146 = scmp.eq.s32.totalorder %s16, 0
    %p147 = por %p145, %p146
    %p148 = scmp.ne.s32.totalorder %s134, %s135
    %p149 = scmp.eq.s32.totalorder %s17, 1
    %p150 = por %p148, %p149
    %p152 = scmp.ne.s32.totalorder %s135, %s151
    %p153 = scmp.eq.s32.totalorder %s17, 0
    %p154 = por %p152, %p153
    %p155 = scmp.le.s32.totalorder 1, %s11
    %p156 = scmp.lt.s32.totalorder %s11, 3
    %p157 = pnand %p155, %p156
    %p158 = pneg %p157
    // Predicated region
    $region9: #{residual_block_forward.1} parent=5 // pred_check
      _
    $region10: #{residual_block_forward.1} parent=5 // pred_check_branch
      %160 = sbr.rel (%p157) target = $region12
    $region11: #{residual_block_forward.1} parent=5 // pred_region
      %s161 = ssub.s32 %s11, 1
      // Predicated region
      $region13: #{residual_block_forward.1} parent=11 // pred_check
        %p162 = pneg %p58
      $region14: #{residual_block_forward.1} parent=11 // pred_check_branch
        %164 = sbr.rel (%p162) target = $region16
      $region15: #{residual_block_forward.1} parent=11 // pred_region
        _
      $region16: #{residual_block_forward.1} parent=11 // pred_fallthru
        _
      // Predicated region
      $region17: #{residual_block_forward.1} parent=11 // pred_check
        %p165 = pneg %p79
      $region18: #{residual_block_forward.1} parent=11 // pred_check_branch
        %167 = sbr.rel (%p165) target = $region20
      $region19: #{residual_block_forward.1} parent=11 // pred_region
        _
      $region20: #{residual_block_forward.1} parent=11 // pred_fallthru
        _
      // Predicated region
      $region21: #{residual_block_forward.1} parent=11 // pred_check
        %p168 = pneg %p100
      $region22: #{residual_block_forward.1} parent=11 // pred_check_branch
        %170 = sbr.rel (%p168) target = $region24
      $region23: #{residual_block_forward.1} parent=11 // pred_region
        _
      $region24: #{residual_block_forward.1} parent=11 // pred_fallthru
        _
      // Predicated region
      $region25: #{residual_block_forward.1} parent=11 // pred_check
        %p171 = pneg %p121
      $region26: #{residual_block_forward.1} parent=11 // pred_check_branch
        %173 = sbr.rel (%p171) target = $region28
      $region27: #{residual_block_forward.1} parent=11 // pred_region
        _
      $region28: #{residual_block_forward.1} parent=11 // pred_fallthru
        _
    $region12: #{residual_block_forward.1} parent=5 // pred_fallthru
      _
    %p174 = scmp.lt.s32.totalorder %s11, 2
    // Predicated region
    $region29: #{residual_block_forward.1} parent=5 // pred_check
      %p175 = pneg %p174
    $region30: #{residual_block_forward.1} parent=5 // pred_check_branch
      %177 = sbr.rel (%p175) target = $region32
    $region31: #{residual_block_forward.1} parent=5 // pred_region
      // Predicated region
      $region33: #{residual_block_forward.1} parent=31 // pred_check
        %p178 = pneg %p31
      $region34: #{residual_block_forward.1} parent=31 // pred_check_branch
        %180 = sbr.rel (%p178) target = $region36
      $region35: #{residual_block_forward.1} parent=31 // pred_region
        %p181 = scmp.lt.s32.totalorder %s11, 1
        %s182 = scalar_select %p181, %s11, 1
        %s183 = smul.addr %s182, 3
        %s184 = smul.addr %s183, 4
        %s185 = scalar_lea.vmem %s0, %s184
      $region36: #{residual_block_forward.1} parent=31 // pred_fallthru
        _
    $region32: #{residual_block_forward.1} parent=5 // pred_fallthru
      _
    %p186 = scmp.le.s32.totalorder 1, %s11
    %p187 = scmp.lt.s32.totalorder %s11, 3
    %p188 = pnand %p186, %p187
    %p189 = pneg %p188
    // Predicated region
    $region37: #{residual_block_forward.1} parent=5 // pred_check
      _
    $region38: #{residual_block_forward.1} parent=5 // pred_check_branch
      %191 = sbr.rel (%p188) target = $region40
    $region39: #{residual_block_forward.1} parent=5 // pred_region
      %s192 = ssub.s32 %s11, 1
      %p193 = scmp.lt.s32.totalorder %s16, 1
      %s194 = scalar_select %p193, %s16, 1
      %s195 = smul.addr %s194, 3
      %s196 = smul.addr %s195, 4
      %s197 = scalar_lea.vmem %s0, %s196
      %p198 = pneg %p37
      %p199 = pneg %p34
      %p200 = pneg %p58
      %p201 = pneg %p55
      %p202 = pneg %p79
      %p203 = pneg %p76
      %p204 = pneg %p100
      %p205 = pneg %p97
      %p206 = pneg %p121
      %p207 = pneg %p118
      %p208 = pneg %p147
      %p209 = pneg %p144
      %p210 = scmp.lt.s32.totalorder %s16, 1
      %s211 = scalar_select %p210, %s16, 1
      %s212 = smul.addr %s211, 2
      %s213 = smul.addr %s212, 8
      %s214 = scalar_lea.vmem %s5, %s213
      %p215 = scmp.lt.s32.totalorder %s16, 1
      %s216 = scalar_select %p215, %s16, 1
      %s217 = smul.addr %s216, 3
      %s218 = smul.addr %s217, 4
      %s219 = scalar_lea.vmem %s0, %s218
      %p220 = scmp.lt.s32.totalorder %s16, 1
      %s221 = scalar_select %p220, %s16, 1
      %s222 = smul.addr %s221, 2
      %s223 = smul.addr %s222, 8
      %s224 = scalar_lea.vmem %s5, %s223
      %vm226 = vcmask 516096
      %vm227 = vsmask.f32 256
      %vm228 = vmand %vm226, %vm227
      %v229 = vld [vmem:[#allocation2] sm:$0x1]
      %v230 = vsel %vm228, 0, %v229
      %231 = vst [vmem:[#allocation2] sm:$0x1] %v230
      %vm232 = vsmask.f32 7938
      %vm233 = vmand %vm226, %vm232
      %v234 = vld [vmem:[#allocation2 + $0x8] sm:$0x1]
      %v235 = vsel %vm233, 0, %v234
      %236 = vst [vmem:[#allocation2 + $0x8] sm:$0x1] %v235
      %v237 = vld [vmem:[%s219] sm:$0xf]
      %v238 = vld [vmem:[%s219 + $0x4] sm:$0xf]
      %v239 = vld [vmem:[%s1] sm:$0xf]
      %v240 = vld [vmem:[%s1 + $0x4] sm:$0xf]
      %v241 = vld [vmem:[%s1 + $0x8] sm:$0xf]
      %v242 = vld [vmem:[%s1 + $0xc] sm:$0xf]
      %v243 = vld [vmem:[%s1 + $0x10] sm:$0xf]
      %v244 = vld [vmem:[%s1 + $0x14] sm:$0xf]
      %v245 = vld [vmem:[%s1 + $0x18] sm:$0xf]
      %v246 = vld [vmem:[%s1 + $0x1c] sm:$0xf]
      %v247 = vld [vmem:[%s219 + $0x8] sm:$0x1]
      %s248 = scalar_lea.vmem %s1, 32
      %v249 = vld [vmem:[%s248] sm:$0xf]
      %v250 = vld [vmem:[%s248 + $0x4] sm:$0xf]
      %v251 = vld [vmem:[%s248 + $0x8] sm:$0xf]
      %v252 = vld [vmem:[%s248 + $0xc] sm:$0xf]
      %v253 = vld [vmem:[%s248 + $0x10] sm:$0xf]
      %v254 = vld [vmem:[%s248 + $0x14] sm:$0xf]
      %v255 = vld [vmem:[%s248 + $0x18] sm:$0xf]
      %v256 = vld [vmem:[%s248 + $0x1c] sm:$0xf]
      %v260 = vunpack.c.l.b16 %v237
      %v261 = vunpack.c.l.b16 %v238
      %v262 = vunpack.c.l.b16 %v247
      %v263 = vpack.c.b16 %v261, %v260
      %v264 = vpack.c.b16 %v262, %v262
      %vm265 = vsmask.f32 7424
      %v267 = vshrl.u32 %v263, 16
      %v269 = vshll.u32 %v263, 16
      %v271 = vrot.slane %v269, 1
      %v272 = vor.u32 %v267, %v271
      %v274 = vshll.u32 %v264, 16
      %v276 = vrot.slane %v274, 1
      %v277 = vsel %vm265, %v272, %v276
      %v286 = vunpack.c.l.b16 %v249
      %v287 = vunpack.c.l.b16 %v250
      %v288 = vunpack.c.l.b16 %v251
      %v289 = vunpack.c.l.b16 %v252
      %v290 = vunpack.c.l.b16 %v253
      %v291 = vunpack.c.l.b16 %v254
      %v292 = vunpack.c.l.b16 %v255
      %v293 = vunpack.c.l.b16 %v256
      %v294 = vpack.c.b16 %v287, %v286
      %v295 = vpack.c.b16 %v289, %v288
      %v296 = vpack.c.b16 %v291, %v290
      %v297 = vpack.c.b16 %v293, %v292
      %vm302 = vcmask 523264
      %v304 = vsel %vm302, %v277, 0
      %306 = vmatprep.subr.bf16.mxu0 0
      %307 = vmatpush1.bf16.msra.mxu0 %v294
      %308 = vmatprep.subr.bf16.mxu0 0
      %309 = vmatpush1.bf16.msra.mxu0 %v295
      %310 = vmatprep.subr.bf16.mxu0 0
      %311 = vmatpush1.bf16.msra.mxu0 %v296
      %312 = vmatprep.subr.bf16.mxu0 0
      %313 = vmatpush1.bf16.msra.mxu0 %v297
      %314 = vmatprep.subr.bf16.mxu0 0
      %315 = vmatpush1.bf16.msra.mxu0 0
      %316 = vmatprep.subr.bf16.mxu0 0
      %317 = vmatpush1.bf16.msra.mxu0 0
      %318 = vmatprep.subr.bf16.mxu0 0
      %319 = vmatpush1.bf16.msra.mxu0 0
      %320 = vmatprep.subr.bf16.mxu0 0
      %321 = vmatpush1.bf16.msra.mxu0 0
      %322 = vmatprep.subr.bf16.mxu0 0
      %323 = vmatpush1.bf16.msra.mxu0 0
      %324 = vmatprep.subr.bf16.mxu0 0
      %325 = vmatpush1.bf16.msra.mxu0 0
      %326 = vmatprep.subr.bf16.mxu0 0
      %327 = vmatpush1.bf16.msra.mxu0 0
      %328 = vmatprep.subr.bf16.mxu0 0
      %329 = vmatpush1.bf16.msra.mxu0 0
      %330 = vmatprep.subr.bf16.mxu0 0
      %331 = vmatpush1.bf16.msra.mxu0 0
      %332 = vmatprep.subr.bf16.mxu0 0
      %333 = vmatpush1.bf16.msra.mxu0 0
      %334 = vmatprep.subr.bf16.mxu0 0
      %335 = vmatpush1.bf16.msra.mxu0 0
      %336 = vmatprep.subr.bf16.mxu0 0
      %337 = vmatpush1.bf16.msra.mxu0 0
      %338 = vmatprep.mubr.bf16.mxu0 0
      %339 = vmatmul.mubr.bf16.gmra.mrb[0].mxu0 %v304
      %v340 = vpop.f32.mrb[0].mxu0
      %v341 = vadd.f32 0.0, %v340
      %v342 = vpop.f32.mrb[0].mxu0
      %v343 = vpop.f32.mrb[0].mxu0
      %v344 = vadd.f32 0.0, %v343
      %v345 = vpop.f32.mrb[0].mxu0
      %346 = vdwg.mxu0
      %v355 = vunpack.c.l.b16 %v239
      %v356 = vunpack.c.l.b16 %v240
      %v357 = vunpack.c.l.b16 %v241
      %v358 = vunpack.c.l.b16 %v242
      %v359 = vunpack.c.l.b16 %v243
      %v360 = vunpack.c.l.b16 %v244
      %v361 = vunpack.c.l.b16 %v245
      %v362 = vunpack.c.l.b16 %v246
      %v363 = vpack.c.b16 %v356, %v355
      %v364 = vpack.c.b16 %v358, %v357
      %v365 = vpack.c.b16 %v360, %v359
      %v366 = vpack.c.b16 %v362, %v361
      %v371 = vsel %vm302, %v263, 0
      %373 = vmatprep.subr.bf16.mxu0 0
      %374 = vmatpush1.bf16.msra.mxu0 %v363
      %375 = vmatprep.subr.bf16.mxu0 0
      %376 = vmatpush1.bf16.msra.mxu0 %v364
      %377 = vmatprep.subr.bf16.mxu0 0
      %378 = vmatpush1.bf16.msra.mxu0 %v365
      %379 = vmatprep.subr.bf16.mxu0 0
      %380 = vmatpush1.bf16.msra.mxu0 %v366
      %381 = vmatprep.subr.bf16.mxu0 0
      %382 = vmatpush1.bf16.msra.mxu0 0
      %383 = vmatprep.subr.bf16.mxu0 0
      %384 = vmatpush1.bf16.msra.mxu0 0
      %385 = vmatprep.subr.bf16.mxu0 0
      %386 = vmatpush1.bf16.msra.mxu0 0
      %387 = vmatprep.subr.bf16.mxu0 0
      %388 = vmatpush1.bf16.msra.mxu0 0
      %389 = vmatprep.subr.bf16.mxu0 0
      %390 = vmatpush1.bf16.msra.mxu0 0
      %391 = vmatprep.subr.bf16.mxu0 0
      %392 = vmatpush1.bf16.msra.mxu0 0
      %393 = vmatprep.subr.bf16.mxu0 0
      %394 = vmatpush1.bf16.msra.mxu0 0
      %395 = vmatprep.subr.bf16.mxu0 0
      %396 = vmatpush1.bf16.msra.mxu0 0
      %397 = vmatprep.subr.bf16.mxu0 0
      %398 = vmatpush1.bf16.msra.mxu0 0
      %399 = vmatprep.subr.bf16.mxu0 0
      %400 = vmatpush1.bf16.msra.mxu0 0
      %401 = vmatprep.subr.bf16.mxu0 0
      %402 = vmatpush1.bf16.msra.mxu0 0
      %403 = vmatprep.subr.bf16.mxu0 0
      %404 = vmatpush1.bf16.msra.mxu0 0
      %405 = vmatprep.mubr.bf16.mxu0 0
      %406 = vmatmul.mubr.bf16.gmra.mrb[0].mxu0 %v371
      %v407 = vpop.f32.mrb[0].mxu0
      %v408 = vadd.f32 %v341, %v407
      %v409 = vpop.f32.mrb[0].mxu0
      %v410 = vpop.f32.mrb[0].mxu0
      %v411 = vadd.f32 %v344, %v410
      %v412 = vpop.f32.mrb[0].mxu0
      %413 = vdwg.mxu0
      %v414 = vld [vmem:[%s219] sm:$0xe]
      %s415 = scalar_lea.vmem %s1, 64
      %v416 = vld [vmem:[%s415] sm:$0xf]
      %v417 = vld [vmem:[%s415 + $0x4] sm:$0xf]
      %v418 = vld [vmem:[%s415 + $0x8] sm:$0xf]
      %v419 = vld [vmem:[%s415 + $0xc] sm:$0xf]
      %v420 = vld [vmem:[%s415 + $0x10] sm:$0xf]
      %v421 = vld [vmem:[%s415 + $0x14] sm:$0xf]
      %v422 = vld [vmem:[%s415 + $0x18] sm:$0xf]
      %v423 = vld [vmem:[%s415 + $0x1c] sm:$0xf]
      %v425 = vunpack.c.l.b16 %v414
      %v426 = vpack.c.b16 %v261, %v425
      %vm427 = vcmask 1046528
      %v428 = vrot.slane %v426, 1
      %v429 = vrot.slane %v264, 1
      %v430 = vsel %vm427, %v428, %v429
      %v439 = vunpack.c.l.b16 %v416
      %v440 = vunpack.c.l.b16 %v417
      %v441 = vunpack.c.l.b16 %v418
      %v442 = vunpack.c.l.b16 %v419
      %v443 = vunpack.c.l.b16 %v420
      %v444 = vunpack.c.l.b16 %v421
      %v445 = vunpack.c.l.b16 %v422
      %v446 = vunpack.c.l.b16 %v423
      %v447 = vpack.c.b16 %v440, %v439
      %v448 = vpack.c.b16 %v442, %v441
      %v449 = vpack.c.b16 %v444, %v443
      %v450 = vpack.c.b16 %v446, %v445
      %v456 = vsel %vm302, %v430, 0
      %458 = vmatprep.subr.bf16.mxu0 0
      %459 = vmatpush1.bf16.msra.mxu0 %v447
      %460 = vmatprep.subr.bf16.mxu0 0
      %461 = vmatpush1.bf16.msra.mxu0 %v448
      %462 = vmatprep.subr.bf16.mxu0 0
      %463 = vmatpush1.bf16.msra.mxu0 %v449
      %464 = vmatprep.subr.bf16.mxu0 0
      %465 = vmatpush1.bf16.msra.mxu0 %v450
      %466 = vmatprep.subr.bf16.mxu0 0
      %467 = vmatpush1.bf16.msra.mxu0 0
      %468 = vmatprep.subr.bf16.mxu0 0
      %469 = vmatpush1.bf16.msra.mxu0 0
      %470 = vmatprep.subr.bf16.mxu0 0
      %471 = vmatpush1.bf16.msra.mxu0 0
      %472 = vmatprep.subr.bf16.mxu0 0
      %473 = vmatpush1.bf16.msra.mxu0 0
      %474 = vmatprep.subr.bf16.mxu0 0
      %475 = vmatpush1.bf16.msra.mxu0 0
      %476 = vmatprep.subr.bf16.mxu0 0
      %477 = vmatpush1.bf16.msra.mxu0 0
      %478 = vmatprep.subr.bf16.mxu0 0
      %479 = vmatpush1.bf16.msra.mxu0 0
      %480 = vmatprep.subr.bf16.mxu0 0
      %481 = vmatpush1.bf16.msra.mxu0 0
      %482 = vmatprep.subr.bf16.mxu0 0
      %483 = vmatpush1.bf16.msra.mxu0 0
      %484 = vmatprep.subr.bf16.mxu0 0
      %485 = vmatpush1.bf16.msra.mxu0 0
      %486 = vmatprep.subr.bf16.mxu0 0
      %487 = vmatpush1.bf16.msra.mxu0 0
      %488 = vmatprep.subr.bf16.mxu0 0
      %489 = vmatpush1.bf16.msra.mxu0 0
      %490 = vmatprep.mubr.bf16.mxu0 0
      %491 = vmatmul.mubr.bf16.gmra.mrb[0].mxu0 %v456
      %v492 = vpop.f32.mrb[0].mxu0
      %v493 = vadd.f32 0.0, %v492
      %v494 = vpop.f32.mrb[0].mxu0
      %v495 = vpop.f32.mrb[0].mxu0
      %v496 = vadd.f32 0.0, %v495
      %v497 = vpop.f32.mrb[0].mxu0
      %498 = vdwg.mxu0
      %v499 = vadd.f32 %v408, %v493
      %v500 = vadd.f32 %v411, %v496
      %v501 = vld [vmem:[%s2] sm:$0x1]
      %v503 = vlaneseq
      %v504 = vshrl.u32 %v503, 7
      %v505 = vsub.s32 0, %v504
      %v506 = vrot.slane %v501, %v505
      %v508 = vadd.f32 %v499, %v506
      %v509 = vadd.f32 %v500, %v506
      %v510 = vmax.f32 %v508, 0.0
      %v511 = vmax.f32 %v509, 0.0
      %v512 = vpack.c.bf16 %v511, %v510
      %v514 = vunpack.c.l.b16 %v512
      %v515 = vunpack.c.h.b16 %v512
      %v516 = vpack.c.b16 %v514, %v514
      %v517 = vpack.c.b16 %v515, %v515
      %vm518 = vsmask.f32 4368
      %vm519 = vmor %vm227, %vm518
      %v521 = vshrl.u32 %v516, 16
      %v523 = vrot.slane %v521, 7
      %v524 = vshll.u32 %v516, 16
      %v526 = vor.u32 %v523, %v524
      %v527 = vrot.slane %v523, 4
      %v529 = vshrl.u32 %v517, 16
      %v531 = vrot.slane %v529, 7
      %v532 = vshll.u32 %v517, 16
      %v534 = vor.u32 %v531, %v532
      %v535 = vsel %vm519, %v527, %v534
      %v536 = vrot.slane %v531, 4
      %vm540 = vcmask 519168
      %vm541 = vmand %vm540, %vm232
      %v542 = vld [vmem:[#allocation2] sm:$0xf]
      %v543 = vsel %vm541, %v526, %v542
      %544 = vst [vmem:[#allocation2] sm:$0xf] %v543
      %vm545 = vcmask 519168
      %546 = vst.msk [vmem:[#allocation2 + $0x4] sm:$0xf] %vm545, %v535
      %v547 = vld [vmem:[#allocation2 + $0x8] sm:$0x1]
      %v548 = vsel %vm228, %v536, %v547
      %549 = vst [vmem:[#allocation2 + $0x8] sm:$0x1] %v548
      %v550 = vld [vmem:[#allocation2] sm:$0xf]
      %v551 = vld [vmem:[#allocation2 + $0x4] sm:$0xf]
      %v552 = vld [vmem:[%s3] sm:$0xf]
      %v553 = vld [vmem:[%s3 + $0x4] sm:$0xf]
      %v554 = vld [vmem:[%s3 + $0x8] sm:$0xf]
      %v555 = vld [vmem:[%s3 + $0xc] sm:$0xf]
      %v556 = vld [vmem:[%s3 + $0x10] sm:$0xf]
      %v557 = vld [vmem:[%s3 + $0x14] sm:$0xf]
      %v558 = vld [vmem:[%s3 + $0x18] sm:$0xf]
      %v559 = vld [vmem:[%s3 + $0x1c] sm:$0xf]
      %v560 = vld [vmem:[#allocation2 + $0x8] sm:$0x1]
      %s561 = scalar_lea.vmem %s3, 32
      %v562 = vld [vmem:[%s561] sm:$0xf]
      %v563 = vld [vmem:[%s561 + $0x4] sm:$0xf]
      %v564 = vld [vmem:[%s561 + $0x8] sm:$0xf]
      %v565 = vld [vmem:[%s561 + $0xc] sm:$0xf]
      %v566 = vld [vmem:[%s561 + $0x10] sm:$0xf]
      %v567 = vld [vmem:[%s561 + $0x14] sm:$0xf]
      %v568 = vld [vmem:[%s561 + $0x18] sm:$0xf]
      %v569 = vld [vmem:[%s561 + $0x1c] sm:$0xf]
      %v573 = vunpack.c.l.b16 %v550
      %v574 = vunpack.c.l.b16 %v551
      %v575 = vunpack.c.l.b16 %v560
      %v576 = vpack.c.b16 %v574, %v573
      %v577 = vpack.c.b16 %v575, %v575
      %v579 = vshrl.u32 %v576, 16
      %v581 = vshll.u32 %v576, 16
      %v583 = vrot.slane %v581, 1
      %v584 = vor.u32 %v579, %v583
      %v586 = vshll.u32 %v577, 16
      %v588 = vrot.slane %v586, 1
      %v589 = vsel %vm265, %v584, %v588
      %v598 = vunpack.c.l.b16 %v562
      %v599 = vunpack.c.l.b16 %v563
      %v600 = vunpack.c.l.b16 %v564
      %v601 = vunpack.c.l.b16 %v565
      %v602 = vunpack.c.l.b16 %v566
      %v603 = vunpack.c.l.b16 %v567
      %v604 = vunpack.c.l.b16 %v568
      %v605 = vunpack.c.l.b16 %v569
      %v606 = vpack.c.b16 %v599, %v598
      %v607 = vpack.c.b16 %v601, %v600
      %v608 = vpack.c.b16 %v603, %v602
      %v609 = vpack.c.b16 %v605, %v604
      %v615 = vsel %vm302, %v589, 0
      %617 = vmatprep.subr.bf16.mxu0 0
      %618 = vmatpush1.bf16.msra.mxu0 %v606
      %619 = vmatprep.subr.bf16.mxu0 0
      %620 = vmatpush1.bf16.msra.mxu0 %v607
      %621 = vmatprep.subr.bf16.mxu0 0
      %622 = vmatpush1.bf16.msra.mxu0 %v608
      %623 = vmatprep.subr.bf16.mxu0 0
      %624 = vmatpush1.bf16.msra.mxu0 %v609
      %625 = vmatprep.subr.bf16.mxu0 0
      %626 = vmatpush1.bf16.msra.mxu0 0
      %627 = vmatprep.subr.bf16.mxu0 0
      %628 = vmatpush1.bf16.msra.mxu0 0
      %629 = vmatprep.subr.bf16.mxu0 0
      %630 = vmatpush1.bf16.msra.mxu0 0
      %631 = vmatprep.subr.bf16.mxu0 0
      %632 = vmatpush1.bf16.msra.mxu0 0
      %633 = vmatprep.subr.bf16.mxu0 0
      %634 = vmatpush1.bf16.msra.mxu0 0
      %635 = vmatprep.subr.bf16.mxu0 0
      %636 = vmatpush1.bf16.msra.mxu0 0
      %637 = vmatprep.subr.bf16.mxu0 0
      %638 = vmatpush1.bf16.msra.mxu0 0
      %639 = vmatprep.subr.bf16.mxu0 0
      %640 = vmatpush1.bf16.msra.mxu0 0
      %641 = vmatprep.subr.bf16.mxu0 0
      %642 = vmatpush1.bf16.msra.mxu0 0
      %643 = vmatprep.subr.bf16.mxu0 0
      %644 = vmatpush1.bf16.msra.mxu0 0
      %645 = vmatprep.subr.bf16.mxu0 0
      %646 = vmatpush1.bf16.msra.mxu0 0
      %647 = vmatprep.subr.bf16.mxu0 0
      %648 = vmatpush1.bf16.msra.mxu0 0
      %649 = vmatprep.mubr.bf16.mxu0 0
      %650 = vmatmul.mubr.bf16.gmra.mrb[0].mxu0 %v615
      %v651 = vpop.f32.mrb[0].mxu0
      %v652 = vadd.f32 0.0, %v651
      %v653 = vpop.f32.mrb[0].mxu0
      %v654 = vpop.f32.mrb[0].mxu0
      %v655 = vadd.f32 0.0, %v654
      %v656 = vpop.f32.mrb[0].mxu0
      %657 = vdwg.mxu0
      %v666 = vunpack.c.l.b16 %v552
      %v667 = vunpack.c.l.b16 %v553
      %v668 = vunpack.c.l.b16 %v554
      %v669 = vunpack.c.l.b16 %v555
      %v670 = vunpack.c.l.b16 %v556
      %v671 = vunpack.c.l.b16 %v557
      %v672 = vunpack.c.l.b16 %v558
      %v673 = vunpack.c.l.b16 %v559
      %v674 = vpack.c.b16 %v667, %v666
      %v675 = vpack.c.b16 %v669, %v668
      %v676 = vpack.c.b16 %v671, %v670
      %v677 = vpack.c.b16 %v673, %v672
      %v682 = vsel %vm302, %v576, 0
      %684 = vmatprep.subr.bf16.mxu0 0
      %685 = vmatpush1.bf16.msra.mxu0 %v674
      %686 = vmatprep.subr.bf16.mxu0 0
      %687 = vmatpush1.bf16.msra.mxu0 %v675
      %688 = vmatprep.subr.bf16.mxu0 0
      %689 = vmatpush1.bf16.msra.mxu0 %v676
      %690 = vmatprep.subr.bf16.mxu0 0
      %691 = vmatpush1.bf16.msra.mxu0 %v677
      %692 = vmatprep.subr.bf16.mxu0 0
      %693 = vmatpush1.bf16.msra.mxu0 0
      %694 = vmatprep.subr.bf16.mxu0 0
      %695 = vmatpush1.bf16.msra.mxu0 0
      %696 = vmatprep.subr.bf16.mxu0 0
      %697 = vmatpush1.bf16.msra.mxu0 0
      %698 = vmatprep.subr.bf16.mxu0 0
      %699 = vmatpush1.bf16.msra.mxu0 0
      %700 = vmatprep.subr.bf16.mxu0 0
      %701 = vmatpush1.bf16.msra.mxu0 0
      %702 = vmatprep.subr.bf16.mxu0 0
      %703 = vmatpush1.bf16.msra.mxu0 0
      %704 = vmatprep.subr.bf16.mxu0 0
      %705 = vmatpush1.bf16.msra.mxu0 0
      %706 = vmatprep.subr.bf16.mxu0 0
      %707 = vmatpush1.bf16.msra.mxu0 0
      %708 = vmatprep.subr.bf16.mxu0 0
      %709 = vmatpush1.bf16.msra.mxu0 0
      %710 = vmatprep.subr.bf16.mxu0 0
      %711 = vmatpush1.bf16.msra.mxu0 0
      %712 = vmatprep.subr.bf16.mxu0 0
      %713 = vmatpush1.bf16.msra.mxu0 0
      %714 = vmatprep.subr.bf16.mxu0 0
      %715 = vmatpush1.bf16.msra.mxu0 0
      %716 = vmatprep.mubr.bf16.mxu0 0
      %717 = vmatmul.mubr.bf16.gmra.mrb[0].mxu0 %v682
      %v718 = vpop.f32.mrb[0].mxu0
      %v719 = vadd.f32 %v652, %v718
      %v720 = vpop.f32.mrb[0].mxu0
      %v721 = vpop.f32.mrb[0].mxu0
      %v722 = vadd.f32 %v655, %v721
      %v723 = vpop.f32.mrb[0].mxu0
      %724 = vdwg.mxu0
      %v725 = vld [vmem:[#allocation2] sm:$0xe]
      %s726 = scalar_lea.vmem %s3, 64
      %v727 = vld [vmem:[%s726] sm:$0xf]
      %v728 = vld [vmem:[%s726 + $0x4] sm:$0xf]
      %v729 = vld [vmem:[%s726 + $0x8] sm:$0xf]
      %v730 = vld [vmem:[%s726 + $0xc] sm:$0xf]
      %v731 = vld [vmem:[%s726 + $0x10] sm:$0xf]
      %v732 = vld [vmem:[%s726 + $0x14] sm:$0xf]
      %v733 = vld [vmem:[%s726 + $0x18] sm:$0xf]
      %v734 = vld [vmem:[%s726 + $0x1c] sm:$0xf]
      %v736 = vunpack.c.l.b16 %v725
      %v737 = vpack.c.b16 %v574, %v736
      %v738 = vrot.slane %v737, 1
      %v739 = vrot.slane %v577, 1
      %v740 = vsel %vm427, %v738, %v739
      %v749 = vunpack.c.l.b16 %v727
      %v750 = vunpack.c.l.b16 %v728
      %v751 = vunpack.c.l.b16 %v729
      %v752 = vunpack.c.l.b16 %v730
      %v753 = vunpack.c.l.b16 %v731
      %v754 = vunpack.c.l.b16 %v732
      %v755 = vunpack.c.l.b16 %v733
      %v756 = vunpack.c.l.b16 %v734
      %v757 = vpack.c.b16 %v750, %v749
      %v758 = vpack.c.b16 %v752, %v751
      %v759 = vpack.c.b16 %v754, %v753
      %v760 = vpack.c.b16 %v756, %v755
      %v766 = vsel %vm302, %v740, 0
      %768 = vmatprep.subr.bf16.mxu0 0
      %769 = vmatpush1.bf16.msra.mxu0 %v757
      %770 = vmatprep.subr.bf16.mxu0 0
      %771 = vmatpush1.bf16.msra.mxu0 %v758
      %772 = vmatprep.subr.bf16.mxu0 0
      %773 = vmatpush1.bf16.msra.mxu0 %v759
      %774 = vmatprep.subr.bf16.mxu0 0
      %775 = vmatpush1.bf16.msra.mxu0 %v760
      %776 = vmatprep.subr.bf16.mxu0 0
      %777 = vmatpush1.bf16.msra.mxu0 0
      %778 = vmatprep.subr.bf16.mxu0 0
      %779 = vmatpush1.bf16.msra.mxu0 0
      %780 = vmatprep.subr.bf16.mxu0 0
      %781 = vmatpush1.bf16.msra.mxu0 0
      %782 = vmatprep.subr.bf16.mxu0 0
      %783 = vmatpush1.bf16.msra.mxu0 0
      %784 = vmatprep.subr.bf16.mxu0 0
      %785 = vmatpush1.bf16.msra.mxu0 0
      %786 = vmatprep.subr.bf16.mxu0 0
      %787 = vmatpush1.bf16.msra.mxu0 0
      %788 = vmatprep.subr.bf16.mxu0 0
      %789 = vmatpush1.bf16.msra.mxu0 0
      %790 = vmatprep.subr.bf16.mxu0 0
      %791 = vmatpush1.bf16.msra.mxu0 0
      %792 = vmatprep.subr.bf16.mxu0 0
      %793 = vmatpush1.bf16.msra.mxu0 0
      %794 = vmatprep.subr.bf16.mxu0 0
      %795 = vmatpush1.bf16.msra.mxu0 0
      %796 = vmatprep.subr.bf16.mxu0 0
      %797 = vmatpush1.bf16.msra.mxu0 0
      %798 = vmatprep.subr.bf16.mxu0 0
      %799 = vmatpush1.bf16.msra.mxu0 0
      %800 = vmatprep.mubr.bf16.mxu0 0
      %801 = vmatmul.mubr.bf16.gmra.mrb[0].mxu0 %v766
      %v802 = vpop.f32.mrb[0].mxu0
      %v803 = vadd.f32 0.0, %v802
      %v804 = vpop.f32.mrb[0].mxu0
      %v805 = vpop.f32.mrb[0].mxu0
      %v806 = vadd.f32 0.0, %v805
      %v807 = vpop.f32.mrb[0].mxu0
      %808 = vdwg.mxu0
      %v809 = vadd.f32 %v719, %v803
      %v810 = vadd.f32 %v722, %v806
      %v811 = vld [vmem:[%s4] sm:$0x1]
      %v813 = vlaneseq
      %v814 = vshrl.u32 %v813, 7
      %v815 = vsub.s32 0, %v814
      %v816 = vrot.slane %v811, %v815
      %v818 = vadd.f32 %v809, %v816
      %v819 = vadd.f32 %v810, %v816
      %v820 = vmax.f32 %v818, 0.0
      %v821 = vmax.f32 %v819, 0.0
      %822 = vst [vmem:[%s224] sm:$0xff] %v820
      %823 = vst [vmem:[%s224 + $0x8] sm:$0xff] %v821
      %p824 = scmp.lt.s32.totalorder %s16, 1
      %s825 = scalar_select %p824, %s16, 1
      %s826 = smul.addr %s825, 2
      %s827 = smul.addr %s826, 8
      %s828 = scalar_lea.vmem %s5, %s827
      // Predicated region
      $region41: #{residual_block_forward.1} parent=39 // pred_check
        %p829 = pneg %p144
      $region42: #{residual_block_forward.1} parent=39 // pred_check_branch
        %831 = sbr.rel (%p829) target = $region44
      $region43: #{residual_block_forward.1} parent=39 // pred_region
        _
      $region44: #{residual_block_forward.1} parent=39 // pred_fallthru
        _
    $region40: #{residual_block_forward.1} parent=5 // pred_fallthru
      _
    %p832 = scmp.le.s32.totalorder 2, %s11
    // Predicated region
    $region45: #{residual_block_forward.1} parent=5 // pred_check
      %p833 = pneg %p832
    $region46: #{residual_block_forward.1} parent=5 // pred_check_branch
      %835 = sbr.rel (%p833) target = $region48
    $region47: #{residual_block_forward.1} parent=5 // pred_region
      %s836 = ssub.s32 %s11, 2
      // Predicated region
      $region49: #{residual_block_forward.1} parent=47 // pred_check
        %p837 = pneg %p150
      $region50: #{residual_block_forward.1} parent=47 // pred_check_branch
        %839 = sbr.rel (%p837) target = $region52
      $region51: #{residual_block_forward.1} parent=47 // pred_region
        %p840 = scmp.lt.s32.totalorder %s17, 1
        %s841 = scalar_select %p840, %s17, 1
        %s842 = smul.addr %s841, 2
        %s843 = smul.addr %s842, 8
        %s844 = scalar_lea.vmem %s5, %s843
      $region52: #{residual_block_forward.1} parent=47 // pred_fallthru
        _
    $region48: #{residual_block_forward.1} parent=5 // pred_fallthru
      _
  $region6: #{residual_block_forward.1} parent=0 // loop_footer
    %s15 = sadd.s32 1, %s11
  $region7: #{residual_block_forward.1} parent=0 // loop_footer_branch
    %10 = sbr.rel target = $region3
  $region8: #{residual_block_forward.1} parent=0 // loop_exit
    _

</llo_original>
